<compile_context>
chip_gen: v7x
topology: tpu7x:2x2x1
jax: 0.10.0
libtpu: 0.0.40
codegen_flags: <defaults>
</compile_context>

<pallas_src>
import functools

import jax
import jax.numpy as jnp
from jax import lax
from jax.experimental import pallas as pl
from jax.experimental.pallas import tpu as pltpu


def _round_up(n, mult):
    return ((n + mult - 1) // mult) * mult


def _bottleneck_loss_kernel(x_ref, wd_ref, bd_ref, gamma_ref, beta_ref,
                            a_ref, lb_ref, wam_ref, out_ref,
                            xh_scr, m_scr, l_scr, tgt_scr,
                            *, m, s, eps, c_actual, c_pad, tile_c):
    k = pl.program_id(0)

    # ---- one-time: Bottleneck (Linear -> BN train-mode -> PReLU) + row norm ----
    @pl.when(k == 0)
    def _init():
        h = jnp.dot(x_ref[...], wd_ref[...],
                    preferred_element_type=jnp.float32)          # (B, H) bf16 MXU
        h = h + bd_ref[...]

        # BatchNorm1d training-mode (biased batch variance), fused affine.
        mean = jnp.mean(h, axis=0, keepdims=True)
        hc = h - mean
        var = jnp.mean(hc * hc, axis=0, keepdims=True)
        scale = gamma_ref[...] * lax.rsqrt(var + eps)
        shift = beta_ref[...] - mean * scale
        h = h * scale + shift

        # PReLU (single shared slope, read from SMEM).
        a = a_ref[0, 0]
        h = jnp.where(h > 0.0, h, a * h)

        # Row L2 normalization folded in once; clamp on sum-of-squares (1e-24)
        # preserves torch's clamp(norm, min=1e-12) behavior near zero vectors.
        ssq = jnp.sum(h * h, axis=1, keepdims=True)
        inv = lax.rsqrt(jnp.maximum(ssq, 1e-24))
        xh_scr[...] = (h * inv).astype(xh_scr.dtype)             # bf16 MXU operand

        m_scr[...] = jnp.full_like(m_scr, -jnp.inf)
        l_scr[...] = jnp.zeros_like(l_scr)
        tgt_scr[...] = jnp.zeros_like(tgt_scr)

    # ---- streaming AMSoftmax over class tiles ----
    wam = wam_ref[...]                                           # (H, TC) bf16
    wam_f32 = wam.astype(jnp.float32)
    col_ssq = jnp.sum(wam_f32 * wam_f32, axis=0, keepdims=True)  # (1, TC)
    col_inv = lax.rsqrt(jnp.maximum(col_ssq, 1e-24))

    costh = jnp.dot(xh_scr[...], wam,
                    preferred_element_type=jnp.float32) * col_inv   # (B, TC)

    lb = lb_ref[...]                                             # (B, 1) int32
    col = k * tile_c + lax.broadcasted_iota(jnp.int32, costh.shape, 1)
    onehot = (col == lb).astype(jnp.float32)                     # margin mask

    logits = s * (costh - m * onehot)

    # Target logit from the *unmasked* logits (onehot is 0 on padded columns).
    tgt_scr[...] += jnp.sum(logits * onehot, axis=1, keepdims=True)

    if c_actual < c_pad:  # static: only mask when padding exists
        logits = jnp.where(col < c_actual, logits, -jnp.inf)

    # Online log-sum-exp (every tile holds >= 1 valid column by construction).
    tile_max = jnp.max(logits, axis=1, keepdims=True)
    m_new = jnp.maximum(m_scr[...], tile_max)
    alpha = jnp.exp(m_scr[...] - m_new)
    l_scr[...] = alpha * l_scr[...] + jnp.sum(jnp.exp(logits - m_new),
                                              axis=1, keepdims=True)
    m_scr[...] = m_new

    # ---- finalize: mean cross-entropy ----
    @pl.when(k == pl.num_programs(0) - 1)
    def _finish():
        per_example = m_scr[...] + jnp.log(l_scr[...]) - tgt_scr[...]   # (B, 1)
        b = per_example.shape[0]
        out_ref[0, 0] = jnp.sum(per_example) / jnp.float32(b)


def _vmem_limit_bytes(B, F, H, TC):
    f32 = 4
    est = (
        B * F * 2 + F * H * 2                  # bf16 x, dense weight
        + 3 * H * f32 + B * f32                # bias / gamma / beta / labels
        + 2 * H * TC * 2                       # double-buffered bf16 wam tile
        + B * H * 2 + 4 * B * f32              # bf16 feature scratch + (B,1) scratch
        + 8 * B * TC * f32                     # per-tile temporaries / vregs
    )
    est = int(est * 1.5) + (4 << 20)
    return max(16 << 20, min(est, 64 << 20))


def bottleneck_loss(x, label, params, *, m=0.3, s=15.0, eps=1e-5):
    """x: (B, in_feats) f32, label: (B,) int32. Returns scalar f32 loss."""
    B, F = x.shape
    wd = params["dense_w"]          # (F, 512)
    bd = params["dense_b"]          # (1, 512)
    gamma = params["bn_gamma"]      # (1, 512)
    beta = params["bn_beta"]        # (1, 512)
    a = params["prelu_a"]           # (1, 1)
    wam = params["am_w"]            # (512, C)
    H = wd.shape[1]
    C = wam.shape[1]

    # Class-axis tiling: lane-dense (128-aligned) and zero-padded; padded
    # columns are masked to -inf inside the kernel before the LSE.
    TC = min(1024, _round_up(C, 128))
    C_pad = _round_up(C, TC)
    n_tiles = C_pad // TC
    if C_pad != C:
        wam = jnp.pad(wam, ((0, 0), (0, C_pad - C)))

    # Cast MXU operands to bf16 at the boundary (f32 accumulation in-kernel).
    x_bf = x.astype(jnp.bfloat16)
    wd_bf = wd.astype(jnp.bfloat16)
    wam_bf = wam.astype(jnp.bfloat16)
    lb = label.reshape(B, 1).astype(jnp.int32)

    kernel = functools.partial(
        _bottleneck_loss_kernel,
        m=float(m), s=float(s), eps=float(eps),
        c_actual=int(C), c_pad=int(C_pad), tile_c=int(TC))

    const2d = lambda shape: pl.BlockSpec(shape, lambda k: (0, 0))

    out = pl.pallas_call(
        kernel,
        out_shape=jax.ShapeDtypeStruct((1, 1), jnp.float32),
        grid=(n_tiles,),
        in_specs=[
            const2d((B, F)),                                   # x (bf16)
            const2d((F, H)),                                   # dense weight (bf16)
            const2d((1, H)),                                   # dense bias
            const2d((1, H)),                                   # bn gamma
            const2d((1, H)),                                   # bn beta
            pl.BlockSpec(memory_space=pltpu.MemorySpace.SMEM),  # prelu slope
            const2d((B, 1)),                                   # labels
            pl.BlockSpec((H, TC), lambda k: (0, k)),           # AMSoftmax weight tile
        ],
        out_specs=pl.BlockSpec(memory_space=pltpu.MemorySpace.SMEM),  # scalar loss
        scratch_shapes=[
            pltpu.VMEM((B, H), jnp.bfloat16),   # normalized features (MXU operand)
            pltpu.VMEM((B, 1), jnp.float32),    # running max
            pltpu.VMEM((B, 1), jnp.float32),    # running sum
            pltpu.VMEM((B, 1), jnp.float32),    # target logit
        ],
        compiler_params=pltpu.CompilerParams(
            dimension_semantics=("arbitrary",),
            vmem_limit_bytes=_vmem_limit_bytes(B, F, H, TC)),
    )(x_bf, wd_bf, bd, gamma, beta, a, lb, wam_bf)
    return out[0, 0]


def init_params(key, in_feats, n_classes, hidden=512):
    k1, k2 = jax.random.split(key, 2)
    # nn.init.kaiming_normal_(dense.weight, a=1): gain=1, std = 1/sqrt(fan_in)
    dense_w = (jax.random.normal(k1, (in_feats, hidden), jnp.float32)
               / jnp.sqrt(jnp.float32(in_feats)))
    dense_b = jnp.zeros((1, hidden), jnp.float32)
    bn_gamma = jnp.ones((1, hidden), jnp.float32)
    bn_beta = jnp.zeros((1, hidden), jnp.float32)
    prelu_a = jnp.full((1, 1), 0.25, jnp.float32)
    # nn.init.xavier_normal_(W, gain=1): std = sqrt(2/(fan_in + fan_out))
    am_std = jnp.sqrt(2.0 / jnp.float32(hidden + n_classes))
    am_w = jax.random.normal(k2, (hidden, n_classes), jnp.float32) * am_std
    return {
        "dense_w": dense_w,
        "dense_b": dense_b,
        "bn_gamma": bn_gamma,
        "bn_beta": bn_beta,
        "prelu_a": prelu_a,
        "am_w": am_w,
    }


if __name__ == "__main__":
    B, IN_FEATS, N_CLASSES = 8, 32, 16

    key = jax.random.PRNGKey(0)
    kx, kl, kp = jax.random.split(key, 3)
    x = jax.random.normal(kx, (B, IN_FEATS), jnp.float32)
    label = jax.random.randint(kl, (B,), 0, N_CLASSES, jnp.int32)
    params = init_params(kp, IN_FEATS, N_CLASSES)

    loss = bottleneck_loss(x, label, params)
    loss = jax.block_until_ready(loss)
    assert loss.shape == () and jnp.isfinite(loss)
    print("KERNEL_OK")
</pallas_src>

<mosaic_0001>
module attributes {stable_mosaic.version = 11 : i64} {
  func.func @_bottleneck_loss_kernel(%arg0: i32, %arg1: memref<8x32xbf16, #tpu.memory_space<vmem>>, %arg2: memref<32x512xbf16, #tpu.memory_space<vmem>>, %arg3: memref<1x512xf32, #tpu.memory_space<vmem>>, %arg4: memref<1x512xf32, #tpu.memory_space<vmem>>, %arg5: memref<1x512xf32, #tpu.memory_space<vmem>>, %arg6: memref<1x1xf32, #tpu.memory_space<smem>>, %arg7: memref<8x1xi32, #tpu.memory_space<vmem>>, %arg8: memref<512x128xbf16, #tpu.memory_space<vmem>>, %arg9: memref<1x1xf32, #tpu.memory_space<smem>>, %arg10: memref<8x512xbf16, #tpu.memory_space<vmem>>, %arg11: memref<8x1xf32, #tpu.memory_space<vmem>>, %arg12: memref<8x1xf32, #tpu.memory_space<vmem>>, %arg13: memref<8x1xf32, #tpu.memory_space<vmem>>) attributes {dimension_semantics = [#tpu.dimension_semantics<arbitrary>], iteration_bounds = array<i64: 1>, scalar_prefetch = 0 : i64, scratch_operands = 4 : i64, tpu.core_type = #tpu.core_type<tc>, window_params = [{pipeline_mode = #tpu.pipeline_mode<synchronous>, transform_indices = @transform_0, window_bounds = array<i64: 8, 32>}, {pipeline_mode = #tpu.pipeline_mode<synchronous>, transform_indices = @transform_1, window_bounds = array<i64: 32, 512>}, {pipeline_mode = #tpu.pipeline_mode<synchronous>, transform_indices = @transform_2, window_bounds = array<i64: 1, 512>}, {pipeline_mode = #tpu.pipeline_mode<synchronous>, transform_indices = @transform_3, window_bounds = array<i64: 1, 512>}, {pipeline_mode = #tpu.pipeline_mode<synchronous>, transform_indices = @transform_4, window_bounds = array<i64: 1, 512>}, {transform_indices = @transform_5, window_bounds = array<i64: 1, 1>}, {pipeline_mode = #tpu.pipeline_mode<synchronous>, transform_indices = @transform_6, window_bounds = array<i64: 8, 1>}, {transform_indices = @transform_7, window_bounds = array<i64: 512, 128>}, {transform_indices = @transform_8, window_bounds = array<i64: 1, 1>}]} {
    %c0_i32 = arith.constant 0 : i32
    %0 = arith.cmpi eq, %arg0, %c0_i32 : i32
    %1 = arith.extui %0 : i1 to i32
    %c0_i32_0 = arith.constant 0 : i32
    %2 = arith.cmpi ne, %1, %c0_i32_0 : i32
    scf.if %2 {
      %c0_30 = arith.constant 0 : index
      %c0_31 = arith.constant 0 : index
      %59 = vector.load %arg1[%c0_30, %c0_31] : memref<8x32xbf16, #tpu.memory_space<vmem>>, vector<8x32xbf16>
      %c0_32 = arith.constant 0 : index
      %c0_33 = arith.constant 0 : index
      %60 = vector.load %arg2[%c0_32, %c0_33] : memref<32x512xbf16, #tpu.memory_space<vmem>>, vector<32x512xbf16>
      %cst_34 = arith.constant dense<0.000000e+00> : vector<8x512xf32>
      %61 = tpu.matmul %59, %60, %cst_34 {dimension_numbers = #tpu.dot_dimension_numbers<[1], [0], [0], [1], [0, 0, 1, 1], [], []>} : vector<8x32xbf16>, vector<32x512xbf16>, vector<8x512xf32> -> vector<8x512xf32>
      %c0_35 = arith.constant 0 : index
      %c0_36 = arith.constant 0 : index
      %62 = vector.load %arg3[%c0_35, %c0_36] : memref<1x512xf32, #tpu.memory_space<vmem>>, vector<1x512xf32>
      %63 = vector.broadcast %62 : vector<1x512xf32> to vector<8x512xf32>
      %64 = arith.addf %61, %63 : vector<8x512xf32>
      %cst_37 = arith.constant dense<0.000000e+00> : vector<512xf32>
      %65 = vector.multi_reduction <add>, %64, %cst_37 [0] : vector<8x512xf32> to vector<512xf32>
      %66 = vector.shape_cast %65 : vector<512xf32> to vector<1x512xf32>
      %cst_38 = arith.constant 8.000000e+00 : f32
      %67 = vector.broadcast %cst_38 : f32 to vector<1x512xf32>
      %68 = arith.divf %66, %67 : vector<1x512xf32>
      %69 = vector.broadcast %68 : vector<1x512xf32> to vector<8x512xf32>
      %70 = arith.subf %64, %69 : vector<8x512xf32>
      %71 = arith.mulf %70, %70 : vector<8x512xf32>
      %cst_39 = arith.constant dense<0.000000e+00> : vector<512xf32>
      %72 = vector.multi_reduction <add>, %71, %cst_39 [0] : vector<8x512xf32> to vector<512xf32>
      %73 = vector.shape_cast %72 : vector<512xf32> to vector<1x512xf32>
      %cst_40 = arith.constant 8.000000e+00 : f32
      %74 = vector.broadcast %cst_40 : f32 to vector<1x512xf32>
      %75 = arith.divf %73, %74 : vector<1x512xf32>
      %c0_41 = arith.constant 0 : index
      %c0_42 = arith.constant 0 : index
      %76 = vector.load %arg4[%c0_41, %c0_42] : memref<1x512xf32, #tpu.memory_space<vmem>>, vector<1x512xf32>
      %cst_43 = arith.constant 9.99999974E-6 : f32
      %77 = vector.broadcast %cst_43 : f32 to vector<1x512xf32>
      %78 = arith.addf %75, %77 : vector<1x512xf32>
      %79 = math.rsqrt %78 : vector<1x512xf32>
      %80 = arith.mulf %76, %79 : vector<1x512xf32>
      %c0_44 = arith.constant 0 : index
      %c0_45 = arith.constant 0 : index
      %81 = vector.load %arg5[%c0_44, %c0_45] : memref<1x512xf32, #tpu.memory_space<vmem>>, vector<1x512xf32>
      %82 = arith.mulf %68, %80 : vector<1x512xf32>
      %83 = arith.subf %81, %82 : vector<1x512xf32>
      %84 = vector.broadcast %80 : vector<1x512xf32> to vector<8x512xf32>
      %85 = arith.mulf %64, %84 : vector<8x512xf32>
      %86 = vector.broadcast %83 : vector<1x512xf32> to vector<8x512xf32>
      %87 = arith.addf %85, %86 : vector<8x512xf32>
      %c0_46 = arith.constant 0 : index
      %c0_47 = arith.constant 0 : index
      %88 = memref.load %arg6[%c0_46, %c0_47] : memref<1x1xf32, #tpu.memory_space<smem>>
      %cst_48 = arith.constant 0.000000e+00 : f32
      %89 = vector.broadcast %cst_48 : f32 to vector<8x512xf32>
      %90 = arith.cmpf ogt, %87, %89 : vector<8x512xf32>
      %91 = vector.broadcast %88 : f32 to vector<8x512xf32>
      %92 = arith.mulf %91, %87 : vector<8x512xf32>
      %93 = arith.select %90, %87, %92 : vector<8x512xi1>, vector<8x512xf32>
      %94 = arith.mulf %93, %93 : vector<8x512xf32>
      %cst_49 = arith.constant dense<0.000000e+00> : vector<8xf32>
      %95 = vector.multi_reduction <add>, %94, %cst_49 [1] : vector<8x512xf32> to vector<8xf32>
      %96 = vector.shape_cast %95 : vector<8xf32> to vector<8x1xf32>
      %cst_50 = arith.constant 1.000000e-24 : f32
      %97 = vector.broadcast %cst_50 : f32 to vector<8x1xf32>
      %98 = arith.maximumf %96, %97 : vector<8x1xf32>
      %99 = math.rsqrt %98 : vector<8x1xf32>
      %100 = vector.broadcast %99 : vector<8x1xf32> to vector<8x512xf32>
      %101 = arith.mulf %93, %100 : vector<8x512xf32>
      %102 = arith.truncf %101 : vector<8x512xf32> to vector<8x512xbf16>
      %c0_51 = arith.constant 0 : index
      %c0_52 = arith.constant 0 : index
      %103 = vector.load %arg10[%c0_51, %c0_52] : memref<8x512xbf16, #tpu.memory_space<vmem>>, vector<8x512xbf16>
      tpu.vector_store %arg10[%c0_51, %c0_52], %102 {strides = array<i32>} : memref<8x512xbf16, #tpu.memory_space<vmem>>, vector<8x512xbf16>,
      %cst_53 = arith.constant 0xFF800000 : f32
      %104 = vector.broadcast %cst_53 : f32 to vector<8x1xf32>
      %c0_54 = arith.constant 0 : index
      %c0_55 = arith.constant 0 : index
      %105 = vector.load %arg11[%c0_54, %c0_55] : memref<8x1xf32, #tpu.memory_space<vmem>>, vector<8x1xf32>
      tpu.vector_store %arg11[%c0_54, %c0_55], %104 {strides = array<i32>} : memref<8x1xf32, #tpu.memory_space<vmem>>, vector<8x1xf32>,
      %cst_56 = arith.constant 0.000000e+00 : f32
      %106 = vector.broadcast %cst_56 : f32 to vector<8x1xf32>
      %c0_57 = arith.constant 0 : index
      %c0_58 = arith.constant 0 : index
      %107 = vector.load %arg12[%c0_57, %c0_58] : memref<8x1xf32, #tpu.memory_space<vmem>>, vector<8x1xf32>
      tpu.vector_store %arg12[%c0_57, %c0_58], %106 {strides = array<i32>} : memref<8x1xf32, #tpu.memory_space<vmem>>, vector<8x1xf32>,
      %cst_59 = arith.constant 0.000000e+00 : f32
      %108 = vector.broadcast %cst_59 : f32 to vector<8x1xf32>
      %c0_60 = arith.constant 0 : index
      %c0_61 = arith.constant 0 : index
      %109 = vector.load %arg13[%c0_60, %c0_61] : memref<8x1xf32, #tpu.memory_space<vmem>>, vector<8x1xf32>
      tpu.vector_store %arg13[%c0_60, %c0_61], %108 {strides = array<i32>} : memref<8x1xf32, #tpu.memory_space<vmem>>, vector<8x1xf32>,
    } else {
    }
    %c0 = arith.constant 0 : index
    %c0_1 = arith.constant 0 : index
    %3 = vector.load %arg8[%c0, %c0_1] : memref<512x128xbf16, #tpu.memory_space<vmem>>, vector<512x128xbf16>
    %4 = arith.extf %3 : vector<512x128xbf16> to vector<512x128xf32>
    %5 = arith.mulf %4, %4 : vector<512x128xf32>
    %cst = arith.constant dense<0.000000e+00> : vector<128xf32>
    %6 = vector.multi_reduction <add>, %5, %cst [0] : vector<512x128xf32> to vector<128xf32>
    %7 = vector.shape_cast %6 : vector<128xf32> to vector<1x128xf32>
    %cst_2 = arith.constant 1.000000e-24 : f32
    %8 = vector.broadcast %cst_2 : f32 to vector<1x128xf32>
    %9 = arith.maximumf %7, %8 : vector<1x128xf32>
    %10 = math.rsqrt %9 : vector<1x128xf32>
    %c0_3 = arith.constant 0 : index
    %c0_4 = arith.constant 0 : index
    %11 = vector.load %arg10[%c0_3, %c0_4] : memref<8x512xbf16, #tpu.memory_space<vmem>>, vector<8x512xbf16>
    %cst_5 = arith.constant dense<0.000000e+00> : vector<8x128xf32>
    %12 = tpu.matmul %11, %3, %cst_5 {dimension_numbers = #tpu.dot_dimension_numbers<[1], [0], [0], [1], [0, 0, 1, 1], [], []>} : vector<8x512xbf16>, vector<512x128xbf16>, vector<8x128xf32> -> vector<8x128xf32>
    %13 = vector.broadcast %10 : vector<1x128xf32> to vector<8x128xf32>
    %14 = arith.mulf %12, %13 : vector<8x128xf32>
    %c0_6 = arith.constant 0 : index
    %c0_7 = arith.constant 0 : index
    %15 = vector.load %arg7[%c0_6, %c0_7] : memref<8x1xi32, #tpu.memory_space<vmem>>, vector<8x1xi32>
    %c128_i32 = arith.constant 128 : i32
    %16 = arith.muli %arg0, %c128_i32 : i32
    %17 = tpu.iota {dimensions = array<i32: 1>} : vector<8x128xi32>
    %18 = vector.broadcast %16 : i32 to vector<8x128xi32>
    %19 = arith.addi %18, %17 : vector<8x128xi32>
    %20 = vector.broadcast %15 : vector<8x1xi32> to vector<8x128xi32>
    %21 = arith.cmpi eq, %19, %20 : vector<8x128xi32>
    %22 = arith.extui %21 : vector<8x128xi1> to vector<8x128xi32>
    %23 = arith.sitofp %22 : vector<8x128xi32> to vector<8x128xf32>
    %cst_8 = arith.constant 3.000000e-01 : f32
    %24 = vector.broadcast %cst_8 : f32 to vector<8x128xf32>
    %25 = arith.mulf %24, %23 : vector<8x128xf32>
    %26 = arith.subf %14, %25 : vector<8x128xf32>
    %cst_9 = arith.constant 1.500000e+01 : f32
    %27 = vector.broadcast %cst_9 : f32 to vector<8x128xf32>
    %28 = arith.mulf %27, %26 : vector<8x128xf32>
    %c0_10 = arith.constant 0 : index
    %c0_11 = arith.constant 0 : index
    %29 = vector.load %arg13[%c0_10, %c0_11] : memref<8x1xf32, #tpu.memory_space<vmem>>, vector<8x1xf32>
    %30 = arith.mulf %28, %23 : vector<8x128xf32>
    %cst_12 = arith.constant dense<0.000000e+00> : vector<8xf32>
    %31 = vector.multi_reduction <add>, %30, %cst_12 [1] : vector<8x128xf32> to vector<8xf32>
    %32 = vector.shape_cast %31 : vector<8xf32> to vector<8x1xf32>
    %33 = arith.addf %29, %32 : vector<8x1xf32>
    %c0_13 = arith.constant 0 : index
    %c0_14 = arith.constant 0 : index
    %34 = vector.load %arg13[%c0_13, %c0_14] : memref<8x1xf32, #tpu.memory_space<vmem>>, vector<8x1xf32>
    tpu.vector_store %arg13[%c0_13, %c0_14], %33 {strides = array<i32>} : memref<8x1xf32, #tpu.memory_space<vmem>>, vector<8x1xf32>,
    %c16_i32 = arith.constant 16 : i32
    %35 = vector.broadcast %c16_i32 : i32 to vector<8x128xi32>
    %36 = arith.cmpi slt, %19, %35 : vector<8x128xi32>
    %cst_15 = arith.constant 0xFF800000 : f32
    %37 = vector.broadcast %cst_15 : f32 to vector<8x128xf32>
    %38 = arith.select %36, %28, %37 : vector<8x128xi1>, vector<8x128xf32>
    %cst_16 = arith.constant dense<0xFF800000> : vector<8xf32>
    %39 = vector.multi_reduction <maximumf>, %38, %cst_16 [1] : vector<8x128xf32> to vector<8xf32>
    %40 = vector.shape_cast %39 : vector<8xf32> to vector<8x1xf32>
    %c0_17 = arith.constant 0 : index
    %c0_18 = arith.constant 0 : index
    %41 = vector.load %arg11[%c0_17, %c0_18] : memref<8x1xf32, #tpu.memory_space<vmem>>, vector<8x1xf32>
    %42 = arith.maximumf %41, %40 : vector<8x1xf32>
    %c0_19 = arith.constant 0 : index
    %c0_20 = arith.constant 0 : index
    %43 = vector.load %arg11[%c0_19, %c0_20] : memref<8x1xf32, #tpu.memory_space<vmem>>, vector<8x1xf32>
    %44 = arith.subf %43, %42 : vector<8x1xf32>
    %45 = math.exp %44 : vector<8x1xf32>
    %c0_21 = arith.constant 0 : index
    %c0_22 = arith.constant 0 : index
    %46 = vector.load %arg12[%c0_21, %c0_22] : memref<8x1xf32, #tpu.memory_space<vmem>>, vector<8x1xf32>
    %47 = arith.mulf %45, %46 : vector<8x1xf32>
    %48 = vector.broadcast %42 : vector<8x1xf32> to vector<8x128xf32>
    %49 = arith.subf %38, %48 : vector<8x128xf32>
    %50 = math.exp %49 : vector<8x128xf32>
    %cst_23 = arith.constant dense<0.000000e+00> : vector<8xf32>
    %51 = vector.multi_reduction <add>, %50, %cst_23 [1] : vector<8x128xf32> to vector<8xf32>
    %52 = vector.shape_cast %51 : vector<8xf32> to vector<8x1xf32>
    %53 = arith.addf %47, %52 : vector<8x1xf32>
    %c0_24 = arith.constant 0 : index
    %c0_25 = arith.constant 0 : index
    %54 = vector.load %arg12[%c0_24, %c0_25] : memref<8x1xf32, #tpu.memory_space<vmem>>, vector<8x1xf32>
    tpu.vector_store %arg12[%c0_24, %c0_25], %53 {strides = array<i32>} : memref<8x1xf32, #tpu.memory_space<vmem>>, vector<8x1xf32>,
    %c0_26 = arith.constant 0 : index
    %c0_27 = arith.constant 0 : index
    %55 = vector.load %arg11[%c0_26, %c0_27] : memref<8x1xf32, #tpu.memory_space<vmem>>, vector<8x1xf32>
    tpu.vector_store %arg11[%c0_26, %c0_27], %42 {strides = array<i32>} : memref<8x1xf32, #tpu.memory_space<vmem>>, vector<8x1xf32>,
    %c0_i32_28 = arith.constant 0 : i32
    %56 = arith.cmpi eq, %arg0, %c0_i32_28 : i32
    %57 = arith.extui %56 : i1 to i32
    %c0_i32_29 = arith.constant 0 : i32
    %58 = arith.cmpi ne, %57, %c0_i32_29 : i32
    scf.if %58 {
      %c0_30 = arith.constant 0 : index
      %c0_31 = arith.constant 0 : index
      %59 = vector.load %arg11[%c0_30, %c0_31] : memref<8x1xf32, #tpu.memory_space<vmem>>, vector<8x1xf32>
      %c0_32 = arith.constant 0 : index
      %c0_33 = arith.constant 0 : index
      %60 = vector.load %arg12[%c0_32, %c0_33] : memref<8x1xf32, #tpu.memory_space<vmem>>, vector<8x1xf32>
      %61 = math.log %60 : vector<8x1xf32>
      %62 = arith.addf %59, %61 : vector<8x1xf32>
      %c0_34 = arith.constant 0 : index
      %c0_35 = arith.constant 0 : index
      %63 = vector.load %arg13[%c0_34, %c0_35] : memref<8x1xf32, #tpu.memory_space<vmem>>, vector<8x1xf32>
      %64 = arith.subf %62, %63 : vector<8x1xf32>
      %65 = vector.shape_cast %64 : vector<8x1xf32> to vector<1x8x1xf32>
      %cst_36 = arith.constant dense<0.000000e+00> : vector<1xf32>
      %66 = vector.multi_reduction <add>, %65, %cst_36 [1, 2] : vector<1x8x1xf32> to vector<1xf32>
      %67 = vector.shape_cast %66 : vector<1xf32> to vector<1x1x1xf32>
      %68 = vector.extract %67[0, 0, 0] : f32 from vector<1x1x1xf32>
      %cst_37 = arith.constant 8.000000e+00 : f32
      %69 = arith.divf %68, %cst_37 : f32
      %c0_38 = arith.constant 0 : index
      %c0_39 = arith.constant 0 : index
      %70 = memref.load %arg9[%c0_38, %c0_39] : memref<1x1xf32, #tpu.memory_space<smem>>
      memref.store %69, %arg9[%c0_38, %c0_39] : memref<1x1xf32, #tpu.memory_space<smem>>
    } else {
    }
    return
  }
  func.func @transform_0(%arg0: i32) -> (i32, i32) {
    %c0_i32 = arith.constant 0 : i32
    %c0_i32_0 = arith.constant 0 : i32
    %c0_i32_1 = arith.constant 0 : i32
    return %c0_i32, %c0_i32_0 : i32, i32
  }
  func.func @transform_1(%arg0: i32) -> (i32, i32) {
    %c0_i32 = arith.constant 0 : i32
    %c0_i32_0 = arith.constant 0 : i32
    %c0_i32_1 = arith.constant 0 : i32
    return %c0_i32, %c0_i32_0 : i32, i32
  }
  func.func @transform_2(%arg0: i32) -> (i32, i32) {
    %c0_i32 = arith.constant 0 : i32
    %c0_i32_0 = arith.constant 0 : i32
    %c0_i32_1 = arith.constant 0 : i32
    return %c0_i32, %c0_i32_0 : i32, i32
  }
  func.func @transform_3(%arg0: i32) -> (i32, i32) {
    %c0_i32 = arith.constant 0 : i32
    %c0_i32_0 = arith.constant 0 : i32
    %c0_i32_1 = arith.constant 0 : i32
    return %c0_i32, %c0_i32_0 : i32, i32
  }
  func.func @transform_4(%arg0: i32) -> (i32, i32) {
    %c0_i32 = arith.constant 0 : i32
    %c0_i32_0 = arith.constant 0 : i32
    %c0_i32_1 = arith.constant 0 : i32
    return %c0_i32, %c0_i32_0 : i32, i32
  }
  func.func @transform_5(%arg0: i32) -> (i32, i32) {
    %c0_i32 = arith.constant 0 : i32
    %c0_i32_0 = arith.constant 0 : i32
    %c0_i32_1 = arith.constant 0 : i32
    return %c0_i32, %c0_i32_0 : i32, i32
  }
  func.func @transform_6(%arg0: i32) -> (i32, i32) {
    %c0_i32 = arith.constant 0 : i32
    %c0_i32_0 = arith.constant 0 : i32
    %c0_i32_1 = arith.constant 0 : i32
    return %c0_i32, %c0_i32_0 : i32, i32
  }
  func.func @transform_7(%arg0: i32) -> (i32, i32) {
    %c0_i32 = arith.constant 0 : i32
    %c0_i32_0 = arith.constant 0 : i32
    return %c0_i32, %arg0 : i32, i32
  }
  func.func @transform_8(%arg0: i32) -> (i32, i32) {
    %c0_i32 = arith.constant 0 : i32
    %c0_i32_0 = arith.constant 0 : i32
    %c0_i32_1 = arith.constant 0 : i32
    return %c0_i32, %c0_i32_0 : i32, i32
  }
}

</mosaic_0001>

<llo_original>
// kernel: tpu_custom_call.1
$region0: #{tpu_custom_call.1}
  #allocation0 [shape = 'u32[]', space=smem, size = 0x4, offset = 0x4, fixed_abs, tag = 'smem constant byte address 0x4 - core index']
  #allocation1 [shape = 'u32[144,128]{1,0:T(1,128)}', space=vmem, size = 0x12000, scoped, tag = 'internal scratch']
  #allocation2 [shape = 'bf16[8,512]{1,0:T(8,128)(2,1)}', space=vmem, size = 0x2000, scoped, tag = 'scratch operand']
  #allocation3 [shape = 'f32[8,1]{1,0:T(8,128)}', space=vmem, size = 0x1000, scoped, tag = 'scratch operand']
  #allocation4 [shape = 'f32[8,1]{1,0:T(8,128)}', space=vmem, size = 0x1000, scoped, tag = 'scratch operand']
  #allocation5 [shape = 'f32[8,1]{1,0:T(8,128)}', space=vmem, size = 0x1000, scoped, tag = 'scratch operand']
  #allocation6 [shape = 'f32[1,1]{1,0:T(1,128)S(6)}', space=smem, size = 0x200, scoped, tag = 'scoped memory for tpu_custom_call.1']
  %s0 = inlined_call_operand.vmem [shape: bf16[8,32], index: 0, kind: input, shape index: {}]
  %s1 = inlined_call_operand.hbm [shape: bf16[32,512], index: 1, kind: input, shape index: {}]
  %s2 = inlined_call_operand.vmem [shape: f32[1,512], index: 2, kind: input, shape index: {}]
  %s3 = inlined_call_operand.vmem [shape: f32[1,512], index: 3, kind: input, shape index: {}]
  %s4 = inlined_call_operand.vmem [shape: f32[1,512], index: 4, kind: input, shape index: {}]
  %s5 = inlined_call_operand.<no memory space> [shape: f32[1,1], index: 5, kind: input, shape index: {}]
  %s6 = inlined_call_operand.vmem [shape: s32[8,1], index: 6, kind: input, shape index: {}]
  %s7 = inlined_call_operand.hbm [shape: bf16[512,128], index: 7, kind: input, shape index: {}]
  %s8 = inlined_call_operand.hbm [shape: f32[1,1], index: 8, kind: output, shape index: {}]
  %s9 = sld [smem:[#allocation0]]
  $region58: #{tpu_custom_call.1} parent=0
    _
  %s11 = ssub.s32 1, %s9
  %s12 = scalar_select 0, %s11, %s9
  %13 = sst [smem:[#allocation6]] %s5
  $region1: #{tpu_custom_call.1} parent=0
    #allocation7 [shape = 'u8[32768]{0}', space=vmem, size = 0x8000, scoped, tag = 'input window, operand 1, single buffered']
    #allocation8 [shape = 's32[1]{0}', space=sflag, size = 0x4, scoped, tag = 'scoped memory for tpu_custom_call.1']
    #allocation9 [shape = 's32[1]{0}', space=sflag, size = 0x4, scoped, tag = 'scoped memory for tpu_custom_call.1']
    #allocation10 [shape = 'u8[131072]{0}', space=vmem, size = 0x20000, scoped, tag = 'input window, operand 7, single buffered']
    #allocation11 [shape = 's32[1]{0}', space=sflag, size = 0x4, scoped, tag = 'scoped memory for tpu_custom_call.1']
    #allocation12 [shape = 'u8[512]{0}', space=smem, size = 0x200, scoped, tag = 'output window, operand 0, single buffered']
    %14 = vsyncpa [#allocation8], 0
    %15 = vsyncpa [#allocation11], 0
    %16 = vsyncpa [#allocation9], 0
    // Predicated region
    $region2: #{tpu_custom_call.1} parent=1 // pred_check
      _
    $region3: #{tpu_custom_call.1} parent=1 // pred_check_branch
      %18 = sbr.rel (0) target = $region5
    $region4: #{tpu_custom_call.1} parent=1 // pred_region
      _
    $region5: #{tpu_custom_call.1} parent=1 // pred_fallthru
      _
    // Predicated region
    $region6: #{tpu_custom_call.1} parent=1 // pred_check
      _
    $region7: #{tpu_custom_call.1} parent=1 // pred_check_branch
      %20 = sbr.rel (0) target = $region9
    $region8: #{tpu_custom_call.1} parent=1 // pred_region
      %s22 = ssub.s32 1024, 1024
      %23 = vsyncadd [#allocation8], %s22
      %s24 = sshll.u32 [#allocation7], 4
      %s25 = int_to_ptr.vmem [resolvable:$true] %s24
      %30 = dma.hbm_to_vmem [thread:$0]  %s1, 1024, %s25, [#allocation8], 256, 256, 16
    $region9: #{tpu_custom_call.1} parent=1 // pred_fallthru
      _
    // Predicated region
    $region10: #{tpu_custom_call.1} parent=1 // pred_check
      _
    $region11: #{tpu_custom_call.1} parent=1 // pred_check_branch
      %32 = sbr.rel (0) target = $region13
    $region12: #{tpu_custom_call.1} parent=1 // pred_region
      _
    $region13: #{tpu_custom_call.1} parent=1 // pred_fallthru
      _
    // Predicated region
    $region14: #{tpu_custom_call.1} parent=1 // pred_check
      _
    $region15: #{tpu_custom_call.1} parent=1 // pred_check_branch
      %34 = sbr.rel (0) target = $region17
    $region16: #{tpu_custom_call.1} parent=1 // pred_region
      _
    $region17: #{tpu_custom_call.1} parent=1 // pred_fallthru
      _
    // Predicated region
    $region18: #{tpu_custom_call.1} parent=1 // pred_check
      _
    $region19: #{tpu_custom_call.1} parent=1 // pred_check_branch
      %36 = sbr.rel (0) target = $region21
    $region20: #{tpu_custom_call.1} parent=1 // pred_region
      _
    $region21: #{tpu_custom_call.1} parent=1 // pred_fallthru
      _
    // Predicated region
    $region22: #{tpu_custom_call.1} parent=1 // pred_check
      _
    $region23: #{tpu_custom_call.1} parent=1 // pred_check_branch
      %38 = sbr.rel (0) target = $region25
    $region24: #{tpu_custom_call.1} parent=1 // pred_region
      _
    $region25: #{tpu_custom_call.1} parent=1 // pred_fallthru
      _
    // Predicated region
    $region26: #{tpu_custom_call.1} parent=1 // pred_check
      _
    $region27: #{tpu_custom_call.1} parent=1 // pred_check_branch
      %40 = sbr.rel (0) target = $region29
    $region28: #{tpu_custom_call.1} parent=1 // pred_region
      _
    $region29: #{tpu_custom_call.1} parent=1 // pred_fallthru
      _
    // Predicated region
    $region30: #{tpu_custom_call.1} parent=1 // pred_check
      _
    $region31: #{tpu_custom_call.1} parent=1 // pred_check_branch
      %42 = sbr.rel (0) target = $region33
    $region32: #{tpu_custom_call.1} parent=1 // pred_region
      %s44 = ssub.s32 4096, 4096
      %45 = vsyncadd [#allocation11], %s44
      %s46 = sshll.u32 [#allocation10], 4
      %s47 = int_to_ptr.vmem [resolvable:$true] %s46
      %52 = dma.hbm_to_vmem [thread:$0]  %s7, 4096, %s47, [#allocation11], 64, 64, 4
    $region33: #{tpu_custom_call.1} parent=1 // pred_fallthru
      _
    // Predicated region
    $region34: #{tpu_custom_call.1} parent=1 // pred_check
      _
    $region35: #{tpu_custom_call.1} parent=1 // pred_check_branch
      %54 = sbr.rel (0) target = $region37
    $region36: #{tpu_custom_call.1} parent=1 // pred_region
      %55 = dma.done [#allocation8], 1024
    $region37: #{tpu_custom_call.1} parent=1 // pred_fallthru
      _
    // Predicated region
    $region38: #{tpu_custom_call.1} parent=1 // pred_check
      _
    $region39: #{tpu_custom_call.1} parent=1 // pred_check_branch
      %57 = sbr.rel (0) target = $region41
    $region40: #{tpu_custom_call.1} parent=1 // pred_region
      %58 = dma.done [#allocation11], 4096
    $region41: #{tpu_custom_call.1} parent=1 // pred_fallthru
      _
    %p60 = scmp.eq.s32.totalorder 0, 0
    // Predicated region
    $region42: #{tpu_custom_call.1} parent=1 // pred_check
      %p61 = pneg %p60
    $region43: #{tpu_custom_call.1} parent=1 // pred_check_branch
      %63 = sbr.rel (%p61) target = $region45
    $region44: #{tpu_custom_call.1} parent=1 // pred_region
      %v64 = vld [vmem:[%s0] sm:$0xf]
      %v65 = vld [vmem:[#allocation7] sm:$0xff]
      %v66 = vld [vmem:[#allocation7 + $0x8] sm:$0xff]
      %v67 = vld [vmem:[#allocation7 + $0x10] sm:$0xff]
      %v68 = vld [vmem:[#allocation7 + $0x18] sm:$0xff]
      %v69 = vld [vmem:[#allocation7 + $0x20] sm:$0xff]
      %v70 = vld [vmem:[#allocation7 + $0x28] sm:$0xff]
      %v71 = vld [vmem:[#allocation7 + $0x30] sm:$0xff]
      %v72 = vld [vmem:[#allocation7 + $0x38] sm:$0xff]
      %v73 = vld [vmem:[%s2] sm:$0xf]
      %v75 = vlaneseq
      %v76 = vshrl.u32 %v75, 7
      %v77 = vsub.s32 0, %v76
      %v78 = vrot.slane %v73, %v77
      %v79 = vlaneseq
      %v80 = vshrl.u32 %v79, 7
      %v81 = vsub.s32 1, %v80
      %v82 = vrot.slane %v73, %v81
      %v83 = vlaneseq
      %v84 = vshrl.u32 %v83, 7
      %v85 = vsub.s32 2, %v84
      %v86 = vrot.slane %v73, %v85
      %v87 = vlaneseq
      %v88 = vshrl.u32 %v87, 7
      %v89 = vsub.s32 3, %v88
      %v90 = vrot.slane %v73, %v89
      %v103 = vunpack.c.l.b16 %v65
      %v104 = vunpack.c.h.b16 %v65
      %v105 = vunpack.c.l.b16 %v66
      %v106 = vunpack.c.h.b16 %v66
      %v107 = vunpack.c.l.b16 %v67
      %v108 = vunpack.c.h.b16 %v67
      %v109 = vunpack.c.l.b16 %v68
      %v110 = vunpack.c.h.b16 %v68
      %v111 = vunpack.c.l.b16 %v69
      %v112 = vunpack.c.h.b16 %v69
      %v113 = vunpack.c.l.b16 %v70
      %v114 = vunpack.c.h.b16 %v70
      %v115 = vunpack.c.l.b16 %v71
      %v116 = vunpack.c.h.b16 %v71
      %v117 = vunpack.c.l.b16 %v72
      %v118 = vunpack.c.h.b16 %v72
      %v119 = vpack.c.b16 %v107, %v103
      %v120 = vpack.c.b16 %v108, %v104
      %v121 = vpack.c.b16 %v109, %v105
      %v122 = vpack.c.b16 %v110, %v106
      %v123 = vpack.c.b16 %v115, %v111
      %v124 = vpack.c.b16 %v116, %v112
      %v125 = vpack.c.b16 %v117, %v113
      %v126 = vpack.c.b16 %v118, %v114
      %vm135 = vcmask 261120
      %v137 = vsel %vm135, %v64, 0
      %139 = vmatprep.subr.bf16.mxu0 %v120
      %140 = vmatpush1.bf16.msra.mxu0 %v119
      %141 = vmatprep.subr.bf16.mxu0 %v124
      %142 = vmatpush1.bf16.msra.mxu0 %v123
      %143 = vmatprep.subr.bf16.mxu0 0
      %144 = vmatpush1.bf16.msra.mxu0 0
      %145 = vmatprep.subr.bf16.mxu0 0
      %146 = vmatpush1.bf16.msra.mxu0 0
      %147 = vmatprep.subr.bf16.mxu0 0
      %148 = vmatpush1.bf16.msra.mxu0 0
      %149 = vmatprep.subr.bf16.mxu0 0
      %150 = vmatpush1.bf16.msra.mxu0 0
      %151 = vmatprep.subr.bf16.mxu0 0
      %152 = vmatpush1.bf16.msra.mxu0 0
      %153 = vmatprep.subr.bf16.mxu0 0
      %154 = vmatpush1.bf16.msra.mxu0 0
      %155 = vmatprep.subr.bf16.mxu0 0
      %156 = vmatpush1.bf16.msra.mxu0 0
      %157 = vmatprep.subr.bf16.mxu0 0
      %158 = vmatpush1.bf16.msra.mxu0 0
      %159 = vmatprep.subr.bf16.mxu0 0
      %160 = vmatpush1.bf16.msra.mxu0 0
      %161 = vmatprep.subr.bf16.mxu0 0
      %162 = vmatpush1.bf16.msra.mxu0 0
      %163 = vmatprep.subr.bf16.mxu0 0
      %164 = vmatpush1.bf16.msra.mxu0 0
      %165 = vmatprep.subr.bf16.mxu0 0
      %166 = vmatpush1.bf16.msra.mxu0 0
      %167 = vmatprep.subr.bf16.mxu0 0
      %168 = vmatpush1.bf16.msra.mxu0 0
      %169 = vmatprep.subr.bf16.mxu0 0
      %170 = vmatpush1.bf16.msra.mxu0 0
      %171 = vmatprep.mubr.bf16.mxu0 0
      %172 = vmatmul.mubr.bf16.gmra.mrb[0].mxu0 %v137
      %v173 = vpop.f32.mrb[0].mxu0
      %v174 = vadd.f32 %v78, %v173
      %v175 = vpop.f32.mrb[0].mxu0
      %v176 = vadd.f32 %v82, %v175
      %v177 = vpop.f32.mrb[0].mxu0
      %v178 = vpop.f32.mrb[0].mxu0
      %179 = vdwg.mxu0
      %180 = vmatprep.subr.bf16.mxu0 %v122
      %181 = vmatpush1.bf16.msra.mxu0 %v121
      %182 = vmatprep.subr.bf16.mxu0 %v126
      %183 = vmatpush1.bf16.msra.mxu0 %v125
      %184 = vmatprep.subr.bf16.mxu0 0
      %185 = vmatpush1.bf16.msra.mxu0 0
      %186 = vmatprep.subr.bf16.mxu0 0
      %187 = vmatpush1.bf16.msra.mxu0 0
      %188 = vmatprep.subr.bf16.mxu0 0
      %189 = vmatpush1.bf16.msra.mxu0 0
      %190 = vmatprep.subr.bf16.mxu0 0
      %191 = vmatpush1.bf16.msra.mxu0 0
      %192 = vmatprep.subr.bf16.mxu0 0
      %193 = vmatpush1.bf16.msra.mxu0 0
      %194 = vmatprep.subr.bf16.mxu0 0
      %195 = vmatpush1.bf16.msra.mxu0 0
      %196 = vmatprep.subr.bf16.mxu0 0
      %197 = vmatpush1.bf16.msra.mxu0 0
      %198 = vmatprep.subr.bf16.mxu0 0
      %199 = vmatpush1.bf16.msra.mxu0 0
      %200 = vmatprep.subr.bf16.mxu0 0
      %201 = vmatpush1.bf16.msra.mxu0 0
      %202 = vmatprep.subr.bf16.mxu0 0
      %203 = vmatpush1.bf16.msra.mxu0 0
      %204 = vmatprep.subr.bf16.mxu0 0
      %205 = vmatpush1.bf16.msra.mxu0 0
      %206 = vmatprep.subr.bf16.mxu0 0
      %207 = vmatpush1.bf16.msra.mxu0 0
      %208 = vmatprep.subr.bf16.mxu0 0
      %209 = vmatpush1.bf16.msra.mxu0 0
      %210 = vmatprep.subr.bf16.mxu0 0
      %211 = vmatpush1.bf16.msra.mxu0 0
      %212 = vmatprep.mubr.bf16.mxu0 0
      %213 = vmatmul.mubr.bf16.gmra.mrb[0].mxu0 %v137
      %v214 = vpop.f32.mrb[0].mxu0
      %v215 = vadd.f32 %v86, %v214
      %v216 = vpop.f32.mrb[0].mxu0
      %v217 = vadd.f32 %v90, %v216
      %v218 = vpop.f32.mrb[0].mxu0
      %v219 = vpop.f32.mrb[0].mxu0
      %220 = vdwg.mxu0
      %v221 = vrot.slane %v174, 4
      %v222 = vadd.f32 %v174, %v221
      %v223 = vrot.slane %v222, 2
      %v224 = vadd.f32 %v222, %v223
      %v225 = vrot.slane %v224, 1
      %v226 = vadd.f32 %v224, %v225
      %v227 = vrot.slane %v176, 4
      %v228 = vadd.f32 %v176, %v227
      %v229 = vrot.slane %v228, 2
      %v230 = vadd.f32 %v228, %v229
      %v231 = vrot.slane %v230, 1
      %v232 = vadd.f32 %v230, %v231
      %v233 = vrot.slane %v215, 4
      %v234 = vadd.f32 %v215, %v233
      %v235 = vrot.slane %v234, 2
      %v236 = vadd.f32 %v234, %v235
      %v237 = vrot.slane %v236, 1
      %v238 = vadd.f32 %v236, %v237
      %v239 = vrot.slane %v217, 4
      %v240 = vadd.f32 %v217, %v239
      %v241 = vrot.slane %v240, 2
      %v242 = vadd.f32 %v240, %v241
      %v243 = vrot.slane %v242, 1
      %v244 = vadd.f32 %v242, %v243
      %v245 = vrcp.pop 8.0
      %v246 = vmul.f32 %v226, %v245
      %v247 = vmul.f32 %v232, %v245
      %v248 = vmul.f32 %v238, %v245
      %v249 = vmul.f32 %v244, %v245
      %v250 = vsub.f32 %v174, %v246
      %v251 = vsub.f32 %v176, %v247
      %v252 = vsub.f32 %v215, %v248
      %v253 = vsub.f32 %v217, %v249
      %v254 = vmul.f32 %v250, %v250
      %v255 = vmul.f32 %v251, %v251
      %v256 = vmul.f32 %v252, %v252
      %v257 = vmul.f32 %v253, %v253
      %v258 = vrot.slane %v254, 4
      %v259 = vadd.f32 %v254, %v258
      %v260 = vrot.slane %v259, 2
      %v261 = vadd.f32 %v259, %v260
      %v262 = vrot.slane %v261, 1
      %v263 = vadd.f32 %v261, %v262
      %v264 = vrot.slane %v255, 4
      %v265 = vadd.f32 %v255, %v264
      %v266 = vrot.slane %v265, 2
      %v267 = vadd.f32 %v265, %v266
      %v268 = vrot.slane %v267, 1
      %v269 = vadd.f32 %v267, %v268
      %v270 = vrot.slane %v256, 4
      %v271 = vadd.f32 %v256, %v270
      %v272 = vrot.slane %v271, 2
      %v273 = vadd.f32 %v271, %v272
      %v274 = vrot.slane %v273, 1
      %v275 = vadd.f32 %v273, %v274
      %v276 = vrot.slane %v257, 4
      %v277 = vadd.f32 %v257, %v276
      %v278 = vrot.slane %v277, 2
      %v279 = vadd.f32 %v277, %v278
      %v280 = vrot.slane %v279, 1
      %v281 = vadd.f32 %v279, %v280
      %v282 = vmul.f32 %v263, %v245
      %v283 = vmul.f32 %v269, %v245
      %v284 = vmul.f32 %v275, %v245
      %v285 = vmul.f32 %v281, %v245
      %v286 = vld [vmem:[%s3] sm:$0xf]
      %v287 = vadd.f32 %v282, 1e-05
      %v288 = vadd.f32 %v283, 1e-05
      %v289 = vadd.f32 %v284, 1e-05
      %v290 = vadd.f32 %v285, 1e-05
      %v291 = vrsqrt.pop %v287
      %v292 = vrsqrt.pop %v288
      %v293 = vrsqrt.pop %v289
      %v294 = vrsqrt.pop %v290
      %v299 = vcombine.low %v291, %v292
      %v300 = vcombine.low %v293, %v294
      %v302 = vunpack.c.l.s4 1966171168
      %v303 = vunpack.c.0.s8 %v302
      %v304 = vlaneseq
      %v305 = vshrl.u32 %v304, 7
      %v306 = vsub.s32 %v303, %v305
      %v307 = vrot.slane %v299, %v306
      %v309 = vunpack.c.l.s4 1966171168
      %v310 = vunpack.c.0.s8 %v309
      %v311 = vlaneseq
      %v312 = vshrl.u32 %v311, 7
      %v313 = vsub.s32 %v310, %v312
      %v314 = vrot.slane %v300, %v313
      %v315 = vcombine.low %v307, %v314
      %v317 = vunpack.c.l.s4 1966171168
      %v318 = vunpack.c.0.s8 %v317
      %v319 = vlaneseq
      %v320 = vshrl.u32 %v319, 7
      %v321 = vsub.s32 %v318, %v320
      %v322 = vrot.slane %v315, %v321
      %v324 = vmul.f32 %v286, %v322
      %v325 = vld [vmem:[%s4] sm:$0xf]
      %v327 = vlaneseq
      %v328 = vshrl.u32 %v327, 7
      %v329 = vsub.s32 0, %v328
      %v330 = vrot.slane %v324, %v329
      %v331 = vlaneseq
      %v332 = vshrl.u32 %v331, 7
      %v333 = vsub.s32 1, %v332
      %v334 = vrot.slane %v324, %v333
      %v335 = vlaneseq
      %v336 = vshrl.u32 %v335, 7
      %v337 = vsub.s32 2, %v336
      %v338 = vrot.slane %v324, %v337
      %v339 = vlaneseq
      %v340 = vshrl.u32 %v339, 7
      %v341 = vsub.s32 3, %v340
      %v342 = vrot.slane %v324, %v341
      %v347 = vmul.f32 %v246, %v330
      %v348 = vmul.f32 %v247, %v334
      %v349 = vmul.f32 %v248, %v338
      %v350 = vmul.f32 %v249, %v342
      %v355 = vcombine.low %v347, %v348
      %v356 = vcombine.low %v349, %v350
      %v358 = vunpack.c.l.s4 1966171168
      %v359 = vunpack.c.0.s8 %v358
      %v360 = vlaneseq
      %v361 = vshrl.u32 %v360, 7
      %v362 = vsub.s32 %v359, %v361
      %v363 = vrot.slane %v355, %v362
      %v365 = vunpack.c.l.s4 1966171168
      %v366 = vunpack.c.0.s8 %v365
      %v367 = vlaneseq
      %v368 = vshrl.u32 %v367, 7
      %v369 = vsub.s32 %v366, %v368
      %v370 = vrot.slane %v356, %v369
      %v371 = vcombine.low %v363, %v370
      %v373 = vunpack.c.l.s4 1966171168
      %v374 = vunpack.c.0.s8 %v373
      %v375 = vlaneseq
      %v376 = vshrl.u32 %v375, 7
      %v377 = vsub.s32 %v374, %v376
      %v378 = vrot.slane %v371, %v377
      %v380 = vsub.f32 %v325, %v378
      %v381 = vmul.f32 %v174, %v330
      %v382 = vmul.f32 %v176, %v334
      %v383 = vmul.f32 %v215, %v338
      %v384 = vmul.f32 %v217, %v342
      %v386 = vlaneseq
      %v387 = vshrl.u32 %v386, 7
      %v388 = vsub.s32 0, %v387
      %v389 = vrot.slane %v380, %v388
      %v390 = vlaneseq
      %v391 = vshrl.u32 %v390, 7
      %v392 = vsub.s32 1, %v391
      %v393 = vrot.slane %v380, %v392
      %v394 = vlaneseq
      %v395 = vshrl.u32 %v394, 7
      %v396 = vsub.s32 2, %v395
      %v397 = vrot.slane %v380, %v396
      %v398 = vlaneseq
      %v399 = vshrl.u32 %v398, 7
      %v400 = vsub.s32 3, %v399
      %v401 = vrot.slane %v380, %v400
      %v406 = vadd.f32 %v381, %v389
      %v407 = vadd.f32 %v382, %v393
      %v408 = vadd.f32 %v383, %v397
      %v409 = vadd.f32 %v384, %v401
      %s410 = sld [smem:[#allocation6]]
      %vm411 = vcmp.gt.f32.partialorder %v406, 0.0
      %vm412 = vcmp.gt.f32.partialorder %v407, 0.0
      %vm413 = vcmp.gt.f32.partialorder %v408, 0.0
      %vm414 = vcmp.gt.f32.partialorder %v409, 0.0
      %v415 = vstv %s410
      %v416 = vmul.f32 %v415, %v406
      %v417 = vmul.f32 %v415, %v407
      %v418 = vmul.f32 %v415, %v408
      %v419 = vmul.f32 %v415, %v409
      %v420 = vsel %vm411, %v406, %v416
      %v421 = vsel %vm412, %v407, %v417
      %v422 = vsel %vm413, %v408, %v418
      %v423 = vsel %vm414, %v409, %v419
      %v424 = vmul.f32 %v420, %v420
      %v425 = vmul.f32 %v421, %v421
      %v426 = vmul.f32 %v422, %v422
      %v427 = vmul.f32 %v423, %v423
      %v428 = vadd.f32 %v424, %v425
      %v429 = vadd.f32 %v428, %v426
      %v430 = vadd.f32 %v429, %v427
      %431 = vadd.xlane.f32.xlu0 %v430
      %v432 = vpop.xlane.xlu0 %431
      %v433 = vmax.f32 %v432, 1e-24
      %v434 = vrsqrt.pop %v433
      %v435 = vmul.f32 %v420, %v434
      %v436 = vmul.f32 %v421, %v434
      %v437 = vmul.f32 %v422, %v434
      %v438 = vmul.f32 %v423, %v434
      %v439 = vpack.c.bf16 %v435, %v435
      %v440 = vpack.c.bf16 %v436, %v436
      %v441 = vpack.c.bf16 %v437, %v437
      %v442 = vpack.c.bf16 %v438, %v438
      %v447 = vunpack.c.l.b16 %v439
      %v448 = vunpack.c.l.b16 %v440
      %v449 = vunpack.c.l.b16 %v441
      %v450 = vunpack.c.l.b16 %v442
      %v451 = vpack.c.b16 %v448, %v447
      %v452 = vpack.c.b16 %v450, %v449
      %455 = vst [vmem:[#allocation2] sm:$0xff] %v451
      %456 = vst [vmem:[#allocation2 + $0x8] sm:$0xff] %v452
      %vm457 = vcmask 7168
      %458 = vst.msk [vmem:[#allocation3] sm:$0xff] %vm457, -inf
      %459 = vst.msk [vmem:[#allocation4] sm:$0xff] %vm457, 0.0
      %460 = vst.msk [vmem:[#allocation5] sm:$0xff] %vm457, 0.0
    $region45: #{tpu_custom_call.1} parent=1 // pred_fallthru
      _
    %v461 = vld [vmem:[#allocation10] sm:$0xf]
    %v462 = vld [vmem:[#allocation10 + $0x4] sm:$0xf]
    %v463 = vld [vmem:[#allocation10 + $0x8] sm:$0xf]
    %v464 = vld [vmem:[#allocation10 + $0xc] sm:$0xf]
    %v465 = vld [vmem:[#allocation10 + $0x10] sm:$0xf]
    %v466 = vld [vmem:[#allocation10 + $0x14] sm:$0xf]
    %v467 = vld [vmem:[#allocation10 + $0x18] sm:$0xf]
    %v468 = vld [vmem:[#allocation10 + $0x1c] sm:$0xf]
    %v469 = vld [vmem:[#allocation10 + $0x20] sm:$0xf]
    %v470 = vld [vmem:[#allocation10 + $0x24] sm:$0xf]
    %v471 = vld [vmem:[#allocation10 + $0x28] sm:$0xf]
    %v472 = vld [vmem:[#allocation10 + $0x2c] sm:$0xf]
    %v473 = vld [vmem:[#allocation10 + $0x30] sm:$0xf]
    %v474 = vld [vmem:[#allocation10 + $0x34] sm:$0xf]
    %v475 = vld [vmem:[#allocation10 + $0x38] sm:$0xf]
    %v476 = vld [vmem:[#allocation10 + $0x3c] sm:$0xf]
    %v477 = vld [vmem:[#allocation10 + $0x40] sm:$0xf]
    %v478 = vld [vmem:[#allocation10 + $0x44] sm:$0xf]
    %v479 = vld [vmem:[#allocation10 + $0x48] sm:$0xf]
    %v480 = vld [vmem:[#allocation10 + $0x4c] sm:$0xf]
    %v481 = vld [vmem:[#allocation10 + $0x50] sm:$0xf]
    %v482 = vld [vmem:[#allocation10 + $0x54] sm:$0xf]
    %v483 = vld [vmem:[#allocation10 + $0x58] sm:$0xf]
    %v484 = vld [vmem:[#allocation10 + $0x5c] sm:$0xf]
    %v485 = vld [vmem:[#allocation10 + $0x60] sm:$0xf]
    %v486 = vld [vmem:[#allocation10 + $0x64] sm:$0xf]
    %v487 = vld [vmem:[#allocation10 + $0x68] sm:$0xf]
    %v488 = vld [vmem:[#allocation10 + $0x6c] sm:$0xf]
    %v489 = vld [vmem:[#allocation10 + $0x70] sm:$0xf]
    %v490 = vld [vmem:[#allocation10 + $0x74] sm:$0xf]
    %v491 = vld [vmem:[#allocation10 + $0x78] sm:$0xf]
    %v492 = vld [vmem:[#allocation10 + $0x7c] sm:$0xf]
    %v493 = vld [vmem:[#allocation10 + $0x80] sm:$0xf]
    %v494 = vld [vmem:[#allocation10 + $0x84] sm:$0xf]
    %v495 = vld [vmem:[#allocation10 + $0x88] sm:$0xf]
    %v496 = vld [vmem:[#allocation10 + $0x8c] sm:$0xf]
    %v497 = vld [vmem:[#allocation10 + $0x90] sm:$0xf]
    %v498 = vld [vmem:[#allocation10 + $0x94] sm:$0xf]
    %v499 = vld [vmem:[#allocation10 + $0x98] sm:$0xf]
    %v500 = vld [vmem:[#allocation10 + $0x9c] sm:$0xf]
    %v501 = vld [vmem:[#allocation10 + $0xa0] sm:$0xf]
    %v502 = vld [vmem:[#allocation10 + $0xa4] sm:$0xf]
    %v503 = vld [vmem:[#allocation10 + $0xa8] sm:$0xf]
    %v504 = vld [vmem:[#allocation10 + $0xac] sm:$0xf]
    %v505 = vld [vmem:[#allocation10 + $0xb0] sm:$0xf]
    %v506 = vld [vmem:[#allocation10 + $0xb4] sm:$0xf]
    %v507 = vld [vmem:[#allocation10 + $0xb8] sm:$0xf]
    %v508 = vld [vmem:[#allocation10 + $0xbc] sm:$0xf]
    %v509 = vld [vmem:[#allocation10 + $0xc0] sm:$0xf]
    %v510 = vld [vmem:[#allocation10 + $0xc4] sm:$0xf]
    %v511 = vld [vmem:[#allocation10 + $0xc8] sm:$0xf]
    %v512 = vld [vmem:[#allocation10 + $0xcc] sm:$0xf]
    %v513 = vld [vmem:[#allocation10 + $0xd0] sm:$0xf]
    %v514 = vld [vmem:[#allocation10 + $0xd4] sm:$0xf]
    %v515 = vld [vmem:[#allocation10 + $0xd8] sm:$0xf]
    %v516 = vld [vmem:[#allocation10 + $0xdc] sm:$0xf]
    %v517 = vld [vmem:[#allocation10 + $0xe0] sm:$0xf]
    %v518 = vld [vmem:[#allocation10 + $0xe4] sm:$0xf]
    %v519 = vld [vmem:[#allocation10 + $0xe8] sm:$0xf]
    %v520 = vld [vmem:[#allocation10 + $0xec] sm:$0xf]
    %v521 = vld [vmem:[#allocation10 + $0xf0] sm:$0xf]
    %v522 = vld [vmem:[#allocation10 + $0xf4] sm:$0xf]
    %v523 = vld [vmem:[#allocation10 + $0xf8] sm:$0xf]
    %v524 = vld [vmem:[#allocation10 + $0xfc] sm:$0xf]
    %v525 = vunpack.c.l.bf16 %v461
    %v526 = vunpack.c.l.bf16 %v462
    %v527 = vunpack.c.l.bf16 %v463
    %v528 = vunpack.c.l.bf16 %v464
    %v529 = vunpack.c.l.bf16 %v465
    %v530 = vunpack.c.l.bf16 %v466
    %v531 = vunpack.c.l.bf16 %v467
    %v532 = vunpack.c.l.bf16 %v468
    %v533 = vunpack.c.l.bf16 %v469
    %v534 = vunpack.c.l.bf16 %v470
    %v535 = vunpack.c.l.bf16 %v471
    %v536 = vunpack.c.l.bf16 %v472
    %v537 = vunpack.c.l.bf16 %v473
    %v538 = vunpack.c.l.bf16 %v474
    %v539 = vunpack.c.l.bf16 %v475
    %v540 = vunpack.c.l.bf16 %v476
    %v541 = vunpack.c.l.bf16 %v477
    %v542 = vunpack.c.l.bf16 %v478
    %v543 = vunpack.c.l.bf16 %v479
    %v544 = vunpack.c.l.bf16 %v480
    %v545 = vunpack.c.l.bf16 %v481
    %v546 = vunpack.c.l.bf16 %v482
    %v547 = vunpack.c.l.bf16 %v483
    %v548 = vunpack.c.l.bf16 %v484
    %v549 = vunpack.c.l.bf16 %v485
    %v550 = vunpack.c.l.bf16 %v486
    %v551 = vunpack.c.l.bf16 %v487
    %v552 = vunpack.c.l.bf16 %v488
    %v553 = vunpack.c.l.bf16 %v489
    %v554 = vunpack.c.l.bf16 %v490
    %v555 = vunpack.c.l.bf16 %v491
    %v556 = vunpack.c.l.bf16 %v492
    %v557 = vunpack.c.l.bf16 %v493
    %v558 = vunpack.c.l.bf16 %v494
    %v559 = vunpack.c.l.bf16 %v495
    %v560 = vunpack.c.l.bf16 %v496
    %v561 = vunpack.c.l.bf16 %v497
    %v562 = vunpack.c.l.bf16 %v498
    %v563 = vunpack.c.l.bf16 %v499
    %v564 = vunpack.c.l.bf16 %v500
    %v565 = vunpack.c.l.bf16 %v501
    %v566 = vunpack.c.l.bf16 %v502
    %v567 = vunpack.c.l.bf16 %v503
    %v568 = vunpack.c.l.bf16 %v504
    %v569 = vunpack.c.l.bf16 %v505
    %v570 = vunpack.c.l.bf16 %v506
    %v571 = vunpack.c.l.bf16 %v507
    %v572 = vunpack.c.l.bf16 %v508
    %v573 = vunpack.c.l.bf16 %v509
    %v574 = vunpack.c.l.bf16 %v510
    %v575 = vunpack.c.l.bf16 %v511
    %v576 = vunpack.c.l.bf16 %v512
    %v577 = vunpack.c.l.bf16 %v513
    %v578 = vunpack.c.l.bf16 %v514
    %v579 = vunpack.c.l.bf16 %v515
    %v580 = vunpack.c.l.bf16 %v516
    %v581 = vunpack.c.l.bf16 %v517
    %v582 = vunpack.c.l.bf16 %v518
    %v583 = vunpack.c.l.bf16 %v519
    %v584 = vunpack.c.l.bf16 %v520
    %v585 = vunpack.c.l.bf16 %v521
    %v586 = vunpack.c.l.bf16 %v522
    %v587 = vunpack.c.l.bf16 %v523
    %v588 = vunpack.c.l.bf16 %v524
    %v589 = vmul.f32 %v525, %v525
    %v590 = vmul.f32 %v526, %v526
    %v591 = vmul.f32 %v527, %v527
    %v592 = vmul.f32 %v528, %v528
    %v593 = vmul.f32 %v529, %v529
    %v594 = vmul.f32 %v530, %v530
    %v595 = vmul.f32 %v531, %v531
    %v596 = vmul.f32 %v532, %v532
    %v597 = vmul.f32 %v533, %v533
    %v598 = vmul.f32 %v534, %v534
    %v599 = vmul.f32 %v535, %v535
    %v600 = vmul.f32 %v536, %v536
    %v601 = vmul.f32 %v537, %v537
    %v602 = vmul.f32 %v538, %v538
    %v603 = vmul.f32 %v539, %v539
    %v604 = vmul.f32 %v540, %v540
    %v605 = vmul.f32 %v541, %v541
    %v606 = vmul.f32 %v542, %v542
    %v607 = vmul.f32 %v543, %v543
    %v608 = vmul.f32 %v544, %v544
    %v609 = vmul.f32 %v545, %v545
    %v610 = vmul.f32 %v546, %v546
    %v611 = vmul.f32 %v547, %v547
    %v612 = vmul.f32 %v548, %v548
    %v613 = vmul.f32 %v549, %v549
    %v614 = vmul.f32 %v550, %v550
    %v615 = vmul.f32 %v551, %v551
    %v616 = vmul.f32 %v552, %v552
    %v617 = vmul.f32 %v553, %v553
    %v618 = vmul.f32 %v554, %v554
    %v619 = vmul.f32 %v555, %v555
    %v620 = vmul.f32 %v556, %v556
    %v621 = vmul.f32 %v557, %v557
    %v622 = vmul.f32 %v558, %v558
    %v623 = vmul.f32 %v559, %v559
    %v624 = vmul.f32 %v560, %v560
    %v625 = vmul.f32 %v561, %v561
    %v626 = vmul.f32 %v562, %v562
    %v627 = vmul.f32 %v563, %v563
    %v628 = vmul.f32 %v564, %v564
    %v629 = vmul.f32 %v565, %v565
    %v630 = vmul.f32 %v566, %v566
    %v631 = vmul.f32 %v567, %v567
    %v632 = vmul.f32 %v568, %v568
    %v633 = vmul.f32 %v569, %v569
    %v634 = vmul.f32 %v570, %v570
    %v635 = vmul.f32 %v571, %v571
    %v636 = vmul.f32 %v572, %v572
    %v637 = vmul.f32 %v573, %v573
    %v638 = vmul.f32 %v574, %v574
    %v639 = vmul.f32 %v575, %v575
    %v640 = vmul.f32 %v576, %v576
    %v641 = vmul.f32 %v577, %v577
    %v642 = vmul.f32 %v578, %v578
    %v643 = vmul.f32 %v579, %v579
    %v644 = vmul.f32 %v580, %v580
    %v645 = vmul.f32 %v581, %v581
    %v646 = vmul.f32 %v582, %v582
    %v647 = vmul.f32 %v583, %v583
    %v648 = vmul.f32 %v584, %v584
    %v649 = vmul.f32 %v585, %v585
    %v650 = vmul.f32 %v586, %v586
    %v651 = vmul.f32 %v587, %v587
    %v652 = vmul.f32 %v588, %v588
    %v653 = vadd.f32 %v589, %v590
    %v654 = vadd.f32 %v653, %v591
    %v655 = vadd.f32 %v654, %v592
    %v656 = vadd.f32 %v655, %v593
    %v657 = vadd.f32 %v656, %v594
    %v658 = vadd.f32 %v657, %v595
    %v659 = vadd.f32 %v658, %v596
    %v660 = vadd.f32 %v659, %v597
    %v661 = vadd.f32 %v660, %v598
    %v662 = vadd.f32 %v661, %v599
    %v663 = vadd.f32 %v662, %v600
    %v664 = vadd.f32 %v663, %v601
    %v665 = vadd.f32 %v664, %v602
    %v666 = vadd.f32 %v665, %v603
    %v667 = vadd.f32 %v666, %v604
    %v668 = vadd.f32 %v667, %v605
    %v669 = vadd.f32 %v668, %v606
    %v670 = vadd.f32 %v669, %v607
    %v671 = vadd.f32 %v670, %v608
    %v672 = vadd.f32 %v671, %v609
    %v673 = vadd.f32 %v672, %v610
    %v674 = vadd.f32 %v673, %v611
    %v675 = vadd.f32 %v674, %v612
    %v676 = vadd.f32 %v675, %v613
    %v677 = vadd.f32 %v676, %v614
    %v678 = vadd.f32 %v677, %v615
    %v679 = vadd.f32 %v678, %v616
    %v680 = vadd.f32 %v679, %v617
    %v681 = vadd.f32 %v680, %v618
    %v682 = vadd.f32 %v681, %v619
    %v683 = vadd.f32 %v682, %v620
    %v684 = vadd.f32 %v683, %v621
    %v685 = vadd.f32 %v684, %v622
    %v686 = vadd.f32 %v685, %v623
    %v687 = vadd.f32 %v686, %v624
    %v688 = vadd.f32 %v687, %v625
    %v689 = vadd.f32 %v688, %v626
    %v690 = vadd.f32 %v689, %v627
    %v691 = vadd.f32 %v690, %v628
    %v692 = vadd.f32 %v691, %v629
    %v693 = vadd.f32 %v692, %v630
    %v694 = vadd.f32 %v693, %v631
    %v695 = vadd.f32 %v694, %v632
    %v696 = vadd.f32 %v695, %v633
    %v697 = vadd.f32 %v696, %v634
    %v698 = vadd.f32 %v697, %v635
    %v699 = vadd.f32 %v698, %v636
    %v700 = vadd.f32 %v699, %v637
    %v701 = vadd.f32 %v700, %v638
    %v702 = vadd.f32 %v701, %v639
    %v703 = vadd.f32 %v702, %v640
    %v704 = vadd.f32 %v703, %v641
    %v705 = vadd.f32 %v704, %v642
    %v706 = vadd.f32 %v705, %v643
    %v707 = vadd.f32 %v706, %v644
    %v708 = vadd.f32 %v707, %v645
    %v709 = vadd.f32 %v708, %v646
    %v710 = vadd.f32 %v709, %v647
    %v711 = vadd.f32 %v710, %v648
    %v712 = vadd.f32 %v711, %v649
    %v713 = vadd.f32 %v712, %v650
    %v714 = vadd.f32 %v713, %v651
    %v715 = vadd.f32 %v714, %v652
    %v716 = vrot.slane %v715, 4
    %v717 = vadd.f32 %v715, %v716
    %v718 = vrot.slane %v717, 2
    %v719 = vadd.f32 %v717, %v718
    %v720 = vrot.slane %v719, 1
    %v721 = vadd.f32 %v719, %v720
    %v722 = vmax.f32 %v721, 1e-24
    %v723 = vrsqrt.pop %v722
    %v724 = vld [vmem:[#allocation2] sm:$0xff]
    %v725 = vld [vmem:[#allocation2 + $0x8] sm:$0xff]
    %v728 = vunpack.c.l.b16 %v724
    %v729 = vunpack.c.h.b16 %v724
    %v730 = vunpack.c.l.b16 %v725
    %v731 = vunpack.c.h.b16 %v725
    %v732 = vpack.c.b16 %v728, %v728
    %v733 = vpack.c.b16 %v729, %v729
    %v734 = vpack.c.b16 %v730, %v730
    %v735 = vpack.c.b16 %v731, %v731
    %v804 = vunpack.c.l.b16 %v461
    %v805 = vunpack.c.l.b16 %v462
    %v806 = vunpack.c.l.b16 %v463
    %v807 = vunpack.c.l.b16 %v464
    %v808 = vunpack.c.l.b16 %v465
    %v809 = vunpack.c.l.b16 %v466
    %v810 = vunpack.c.l.b16 %v467
    %v811 = vunpack.c.l.b16 %v468
    %v812 = vunpack.c.l.b16 %v469
    %v813 = vunpack.c.l.b16 %v470
    %v814 = vunpack.c.l.b16 %v471
    %v815 = vunpack.c.l.b16 %v472
    %v816 = vunpack.c.l.b16 %v473
    %v817 = vunpack.c.l.b16 %v474
    %v818 = vunpack.c.l.b16 %v475
    %v819 = vunpack.c.l.b16 %v476
    %v820 = vunpack.c.l.b16 %v477
    %v821 = vunpack.c.l.b16 %v478
    %v822 = vunpack.c.l.b16 %v479
    %v823 = vunpack.c.l.b16 %v480
    %v824 = vunpack.c.l.b16 %v481
    %v825 = vunpack.c.l.b16 %v482
    %v826 = vunpack.c.l.b16 %v483
    %v827 = vunpack.c.l.b16 %v484
    %v828 = vunpack.c.l.b16 %v485
    %v829 = vunpack.c.l.b16 %v486
    %v830 = vunpack.c.l.b16 %v487
    %v831 = vunpack.c.l.b16 %v488
    %v832 = vunpack.c.l.b16 %v489
    %v833 = vunpack.c.l.b16 %v490
    %v834 = vunpack.c.l.b16 %v491
    %v835 = vunpack.c.l.b16 %v492
    %v836 = vunpack.c.l.b16 %v493
    %v837 = vunpack.c.l.b16 %v494
    %v838 = vunpack.c.l.b16 %v495
    %v839 = vunpack.c.l.b16 %v496
    %v840 = vunpack.c.l.b16 %v497
    %v841 = vunpack.c.l.b16 %v498
    %v842 = vunpack.c.l.b16 %v499
    %v843 = vunpack.c.l.b16 %v500
    %v844 = vunpack.c.l.b16 %v501
    %v845 = vunpack.c.l.b16 %v502
    %v846 = vunpack.c.l.b16 %v503
    %v847 = vunpack.c.l.b16 %v504
    %v848 = vunpack.c.l.b16 %v505
    %v849 = vunpack.c.l.b16 %v506
    %v850 = vunpack.c.l.b16 %v507
    %v851 = vunpack.c.l.b16 %v508
    %v852 = vunpack.c.l.b16 %v509
    %v853 = vunpack.c.l.b16 %v510
    %v854 = vunpack.c.l.b16 %v511
    %v855 = vunpack.c.l.b16 %v512
    %v856 = vunpack.c.l.b16 %v513
    %v857 = vunpack.c.l.b16 %v514
    %v858 = vunpack.c.l.b16 %v515
    %v859 = vunpack.c.l.b16 %v516
    %v860 = vunpack.c.l.b16 %v517
    %v861 = vunpack.c.l.b16 %v518
    %v862 = vunpack.c.l.b16 %v519
    %v863 = vunpack.c.l.b16 %v520
    %v864 = vunpack.c.l.b16 %v521
    %v865 = vunpack.c.l.b16 %v522
    %v866 = vunpack.c.l.b16 %v523
    %v867 = vunpack.c.l.b16 %v524
    %v868 = vpack.c.b16 %v805, %v804
    %v869 = vpack.c.b16 %v807, %v806
    %v870 = vpack.c.b16 %v809, %v808
    %v871 = vpack.c.b16 %v811, %v810
    %v872 = vpack.c.b16 %v813, %v812
    %v873 = vpack.c.b16 %v815, %v814
    %v874 = vpack.c.b16 %v817, %v816
    %v875 = vpack.c.b16 %v819, %v818
    %v876 = vpack.c.b16 %v821, %v820
    %v877 = vpack.c.b16 %v823, %v822
    %v878 = vpack.c.b16 %v825, %v824
    %v879 = vpack.c.b16 %v827, %v826
    %v880 = vpack.c.b16 %v829, %v828
    %v881 = vpack.c.b16 %v831, %v830
    %v882 = vpack.c.b16 %v833, %v832
    %v883 = vpack.c.b16 %v835, %v834
    %v884 = vpack.c.b16 %v837, %v836
    %v885 = vpack.c.b16 %v839, %v838
    %v886 = vpack.c.b16 %v841, %v840
    %v887 = vpack.c.b16 %v843, %v842
    %v888 = vpack.c.b16 %v845, %v844
    %v889 = vpack.c.b16 %v847, %v846
    %v890 = vpack.c.b16 %v849, %v848
    %v891 = vpack.c.b16 %v851, %v850
    %v892 = vpack.c.b16 %v853, %v852
    %v893 = vpack.c.b16 %v855, %v854
    %v894 = vpack.c.b16 %v857, %v856
    %v895 = vpack.c.b16 %v859, %v858
    %v896 = vpack.c.b16 %v861, %v860
    %v897 = vpack.c.b16 %v863, %v862
    %v898 = vpack.c.b16 %v865, %v864
    %v899 = vpack.c.b16 %v867, %v866
    %932 = vmatprep.subr.bf16.mxu0 0
    %933 = vmatpush1.bf16.msra.mxu0 %v868
    %934 = vmatprep.subr.bf16.mxu0 0
    %935 = vmatpush1.bf16.msra.mxu0 %v869
    %936 = vmatprep.subr.bf16.mxu0 0
    %937 = vmatpush1.bf16.msra.mxu0 %v870
    %938 = vmatprep.subr.bf16.mxu0 0
    %939 = vmatpush1.bf16.msra.mxu0 %v871
    %940 = vmatprep.subr.bf16.mxu0 0
    %941 = vmatpush1.bf16.msra.mxu0 %v872
    %942 = vmatprep.subr.bf16.mxu0 0
    %943 = vmatpush1.bf16.msra.mxu0 %v873
    %944 = vmatprep.subr.bf16.mxu0 0
    %945 = vmatpush1.bf16.msra.mxu0 %v874
    %946 = vmatprep.subr.bf16.mxu0 0
    %947 = vmatpush1.bf16.msra.mxu0 %v875
    %948 = vmatprep.subr.bf16.mxu0 0
    %949 = vmatpush1.bf16.msra.mxu0 %v876
    %950 = vmatprep.subr.bf16.mxu0 0
    %951 = vmatpush1.bf16.msra.mxu0 %v877
    %952 = vmatprep.subr.bf16.mxu0 0
    %953 = vmatpush1.bf16.msra.mxu0 %v878
    %954 = vmatprep.subr.bf16.mxu0 0
    %955 = vmatpush1.bf16.msra.mxu0 %v879
    %956 = vmatprep.subr.bf16.mxu0 0
    %957 = vmatpush1.bf16.msra.mxu0 %v880
    %958 = vmatprep.subr.bf16.mxu0 0
    %959 = vmatpush1.bf16.msra.mxu0 %v881
    %960 = vmatprep.subr.bf16.mxu0 0
    %961 = vmatpush1.bf16.msra.mxu0 %v882
    %962 = vmatprep.subr.bf16.mxu0 0
    %963 = vmatpush1.bf16.msra.mxu0 %v883
    %964 = vmatprep.mubr.bf16.mxu0 %v733
    %965 = vmatmul.mubr.bf16.gmra.mrb[0].mxu0 %v732
    %v966 = vpop.f32.mrb[0].mxu0
    %v967 = vadd.f32 0.0, %v966
    %v968 = vpop.f32.mrb[0].mxu0
    %v969 = vpop.f32.mrb[0].mxu0
    %v970 = vpop.f32.mrb[0].mxu0
    %971 = vdwg.mxu0
    %972 = vmatprep.subr.bf16.mxu0 0
    %973 = vmatpush1.bf16.msra.mxu0 %v884
    %974 = vmatprep.subr.bf16.mxu0 0
    %975 = vmatpush1.bf16.msra.mxu0 %v885
    %976 = vmatprep.subr.bf16.mxu0 0
    %977 = vmatpush1.bf16.msra.mxu0 %v886
    %978 = vmatprep.subr.bf16.mxu0 0
    %979 = vmatpush1.bf16.msra.mxu0 %v887
    %980 = vmatprep.subr.bf16.mxu0 0
    %981 = vmatpush1.bf16.msra.mxu0 %v888
    %982 = vmatprep.subr.bf16.mxu0 0
    %983 = vmatpush1.bf16.msra.mxu0 %v889
    %984 = vmatprep.subr.bf16.mxu0 0
    %985 = vmatpush1.bf16.msra.mxu0 %v890
    %986 = vmatprep.subr.bf16.mxu0 0
    %987 = vmatpush1.bf16.msra.mxu0 %v891
    %988 = vmatprep.subr.bf16.mxu0 0
    %989 = vmatpush1.bf16.msra.mxu0 %v892
    %990 = vmatprep.subr.bf16.mxu0 0
    %991 = vmatpush1.bf16.msra.mxu0 %v893
    %992 = vmatprep.subr.bf16.mxu0 0
    %993 = vmatpush1.bf16.msra.mxu0 %v894
    %994 = vmatprep.subr.bf16.mxu0 0
    %995 = vmatpush1.bf16.msra.mxu0 %v895
    %996 = vmatprep.subr.bf16.mxu0 0
    %997 = vmatpush1.bf16.msra.mxu0 %v896
    %998 = vmatprep.subr.bf16.mxu0 0
    %999 = vmatpush1.bf16.msra.mxu0 %v897
    %1000 = vmatprep.subr.bf16.mxu0 0
    %1001 = vmatpush1.bf16.msra.mxu0 %v898
    %1002 = vmatprep.subr.bf16.mxu0 0
    %1003 = vmatpush1.bf16.msra.mxu0 %v899
    %1004 = vmatprep.mubr.bf16.mxu0 %v735
    %1005 = vmatmul.mubr.bf16.gmra.mrb[0].mxu0 %v734
    %v1006 = vpop.f32.mrb[0].mxu0
    %v1007 = vadd.f32 %v967, %v1006
    %v1008 = vpop.f32.mrb[0].mxu0
    %v1009 = vpop.f32.mrb[0].mxu0
    %v1010 = vpop.f32.mrb[0].mxu0
    %1011 = vdwg.mxu0
    %v1012 = vmul.f32 %v1007, %v723
    %v1013 = vld [vmem:[%s6] sm:$0xff]
    %s1014 = smul.u32 0, 128
    %v1015 = vlaneseq
    %v1016 = vand.u32 %v1015, 127
    %v1017 = vstv %s1014
    %v1018 = vadd.s32 %v1017, %v1016
    %1019 = vset.pattern.permute.xlu0 0
    %1020 = vperm.xlu0 %1019, %v1013
    %v1021 = vpop.permute.xlu0 %1020
    %vm1022 = vcmp.eq.s32.totalorder %v1018, %v1021
    %v1023 = vsel %vm1022, 1, 0
    %v1024 = vcvt.s32.f32 %v1023
    %v1025 = vmul.f32 %v1024, 0.3
    %v1026 = vsub.f32 %v1012, %v1025
    %v1027 = vmul.f32 %v1026, 15.0
    %v1028 = vld [vmem:[#allocation5] sm:$0xff]
    %v1029 = vmul.f32 %v1027, %v1024
    %1030 = vadd.xlane.f32.xlu0 %v1029
    %v1031 = vpop.xlane.xlu0 %1030
    %v1032 = vadd.f32 %v1028, %v1031
    %vm1033 = vcmask 7168
    %1034 = vst.msk [vmem:[#allocation5] sm:$0xff] %vm1033, %v1032
    %vm1035 = vcmp.lt.s32.totalorder %v1018, 16
    %v1036 = vsel %vm1035, %v1027, -inf
    %1037 = vmax.xlane.f32.xlu0 %v1036
    %v1038 = vpop.xlane.xlu0 %1037
    %v1039 = vld [vmem:[#allocation3] sm:$0xff]
    %v1040 = vmax.f32 %v1039, %v1038
    %v1041 = vsub.f32 %v1039, %v1040
    %v1042 = vmul.f32 %v1041, 1.442695
    %v1043 = vpow.pop %v1042
    %v1044 = vld [vmem:[#allocation4] sm:$0xff]
    %v1045 = vmul.f32 %v1043, %v1044
    %1047 = vset.pattern.permute.xlu0 0
    %1048 = vperm.xlu0 %1047, %v1040
    %v1049 = vpop.permute.xlu0 %1048
    %v1051 = vsub.f32 %v1036, %v1049
    %v1052 = vmul.f32 %v1051, 1.442695
    %v1053 = vpow.pop %v1052
    %1054 = vadd.xlane.f32.xlu0 %v1053
    %v1055 = vpop.xlane.xlu0 %1054
    %v1056 = vadd.f32 %v1045, %v1055
    %1057 = vst.msk [vmem:[#allocation4] sm:$0xff] %vm1033, %v1056
    %1058 = vst.msk [vmem:[#allocation3] sm:$0xff] %vm1033, %v1040
    // Predicated region
    $region46: #{tpu_custom_call.1} parent=1 // pred_check
      %p1059 = pneg %p60
    $region47: #{tpu_custom_call.1} parent=1 // pred_check_branch
      %1061 = sbr.rel (%p1059) target = $region49
    $region48: #{tpu_custom_call.1} parent=1 // pred_region
      %v1062 = vld [vmem:[#allocation3] sm:$0xff]
      %v1063 = vld [vmem:[#allocation4] sm:$0xff]
      %v1064 = vlog2.pop %v1063
      %v1065 = vmul.f32 %v1064, 0.6931472
      %v1066 = vadd.f32 %v1062, %v1065
      %v1067 = vld [vmem:[#allocation5] sm:$0xff]
      %v1068 = vsub.f32 %v1066, %v1067
      %v1069 = vsel %vm1033, %v1068, 0.0
      %1070 = vadd.xlane.f32.xlu0 %v1069
      %v1071 = vpop.xlane.xlu0 %1070
      %v1072 = vrot.slane %v1071, 4
      %v1073 = vadd.f32 %v1071, %v1072
      %v1074 = vrot.slane %v1073, 2
      %v1075 = vadd.f32 %v1073, %v1074
      %v1076 = vrot.slane %v1075, 1
      %v1077 = vadd.f32 %v1075, %v1076
      %s1078 = vtos %v1077
      %v1079 = vrcp.pop 8.0
      %s1080 = vtos %v1079
      %s1081 = smul.f32 %s1078, %s1080
      %s1082 = scalar_lea.smem [#allocation12], 0
      %1083 = sst [smem:[%s1082]] %s1081
    $region49: #{tpu_custom_call.1} parent=1 // pred_fallthru
      _
    // Predicated region
    $region50: #{tpu_custom_call.1} parent=1 // pred_check
      _
    $region51: #{tpu_custom_call.1} parent=1 // pred_check_branch
      %1085 = sbr.rel (0) target = $region53
    $region52: #{tpu_custom_call.1} parent=1 // pred_region
      %s1087 = ssub.s32 16, 16
      %1088 = vsyncadd [#allocation9], %s1087
      %1091 = dma.smem_to_hbm [#allocation12], 16, %s8, [#allocation9]
    $region53: #{tpu_custom_call.1} parent=1 // pred_fallthru
      _
    // Predicated region
    $region54: #{tpu_custom_call.1} parent=1 // pred_check
      _
    $region55: #{tpu_custom_call.1} parent=1 // pred_check_branch
      %1093 = sbr.rel (0) target = $region57
    $region56: #{tpu_custom_call.1} parent=1 // pred_region
      %1094 = dma.done [#allocation9], 16
    $region57: #{tpu_custom_call.1} parent=1 // pred_fallthru
      _
    %1095 = sfence
    %1096 = vsyncpa [#allocation8], 1
    %1097 = vsyncpa [#allocation11], 1
    %1098 = vsyncpa [#allocation9], 1

</llo_original>
